<compile_context>
chip_gen: v7x
topology: tpu7x:2x2x1
jax: 0.10.0
libtpu: 0.0.40
codegen_flags: <defaults>
</compile_context>

<pallas_src>
import numpy as np
import jax
import jax.numpy as jnp
from jax.experimental import pallas as pl
from jax.experimental.pallas import tpu as pltpu


# ------------------------------- kernel 1 ------------------------------------
def _softmax_err_kernel(logits_ref, labels_ref, err_ref, fg_ref):
    """Softmax over classes + per-class |fg - p| errors, lane-dense output.

    logits_ref: (1, C, T) f32    labels_ref: (1, 1, T) i32
    err_ref: (C, T) f32          fg_ref: (C, T) bf16   (pixels on the lane axis)
    """
    logits = logits_ref[0].astype(jnp.float32)              # (C, T)
    labels = labels_ref[0]                                   # (1, T)
    C, T = logits.shape

    # numerically stable softmax along the class (sublane) axis
    m = jnp.max(logits, axis=0, keepdims=True)                # (1, T)
    e = jnp.exp(logits - m)                                    # EUP
    denom = jnp.sum(e, axis=0, keepdims=True)                  # (1, T)
    p = e * pl.reciprocal(denom, approx=True)                  # EUP recip (free slot)

    class_ids = jax.lax.broadcasted_iota(jnp.int32, (C, T), 0)
    fg = (class_ids == labels).astype(jnp.float32)             # (C, T)

    valid = labels >= 0                                         # padded pixels = -1
    err_ref[...] = jnp.where(valid, jnp.abs(fg - p), 0.0)
    fg_ref[...] = fg.astype(jnp.bfloat16)                       # 0/1 exact in bf16


# ------------------------------- kernel 2 ------------------------------------
def _lovasz_grad_dot_kernel(lane_ref, err_ref, fg_ref, gts_ref, loss_ref, cum_ref):
    """Sequential scan over descending-sorted errors.

    lane_ref : (1, T) i32   lane index 0..T-1 (constant block -> VMEM resident)
    err_ref  : (C, T) f32   sorted errors (pixels on lanes)
    fg_ref   : (C, T) bf16  sorted foreground mask
    gts_ref  : (C, 1) f32   total foreground count per class
    loss_ref : (C, 1) f32   output accumulator (resident across grid)
    cum_ref  : (C, 1) f32   VMEM carry: cumsum(fg) up to previous tile
    """
    t = pl.program_id(0)

    @pl.when(t == 0)
    def _():
        loss_ref[...] = jnp.zeros_like(loss_ref)
        cum_ref[...] = jnp.zeros_like(cum_ref)

    fg = fg_ref[...].astype(jnp.float32)                       # (C, T)
    err = err_ref[...]                                          # (C, T)
    C, T = fg.shape
    lane = lane_ref[...]                                        # (1, T) i32

    # In-tile inclusive cumsum along lanes: Hillis–Steele scan with XLU rolls.
    # roll(x, s) brings element i-s to position i (circular); the lane mask
    # zeroes wrapped-around contributions.  log2(T) steps, no T^2 operand.
    cum_tile = fg
    s = 1
    while s < T:
        shifted = pltpu.roll(cum_tile, shift=s, axis=1)
        cum_tile = cum_tile + jnp.where(lane >= s, shifted, 0.0)
        s *= 2

    cum = cum_ref[...] + cum_tile                               # global inclusive cumsum
    cum_prev = cum - fg                                         # exclusive cumsum

    pos = (lane + t * T + 1).astype(jnp.float32)                # 1-based global index
    gts = gts_ref[...]                                          # (C, 1)

    # Lovász-extension gradient: grad_i = jaccard_i - jaccard_{i-1}
    # (jaccard_{i-1} recomputed from the exclusive cumsum — exact across tile
    #  boundaries because of the carried cumsum.)
    union = gts + (pos - cum)                                   # >= 1 always
    union_prev = jnp.maximum(gts + (pos - 1.0 - cum_prev), 1e-6)
    jac = 1.0 - (gts - cum) / union
    jac_prev = 1.0 - (gts - cum_prev) / union_prev
    grad = jac - jac_prev

    loss_ref[...] = loss_ref[...] + jnp.sum(err * grad, axis=1, keepdims=True)
    cum_ref[...] = cum[:, T - 1:]


# -------------------------------- wrapper -------------------------------------
def lovasz_loss_softmax(predict, target, *, tile=2048):
    """Forward pass of LovaszLossSoftmax (softmax + Lovász-Softmax, classes='present')."""
    N, C, H, W = predict.shape
    HW = H * W
    tile = max(128, (tile // 128) * 128)
    tile_hw = min(tile, ((HW + 127) // 128) * 128)
    n_tiles = (HW + tile_hw - 1) // tile_hw
    HW_pad = n_tiles * tile_hw
    P_pad = N * HW_pad

    logits = predict.reshape(N, C, HW).astype(jnp.float32)
    labels = target.reshape(N, 1, HW).astype(jnp.int32)
    if HW_pad != HW:  # padded pixels marked -1 -> fg=0, err=0 -> contribute nothing
        logits = jnp.pad(logits, ((0, 0), (0, 0), (0, HW_pad - HW)))
        labels = jnp.pad(labels, ((0, 0), (0, 0), (0, HW_pad - HW)),
                         constant_values=-1)

    # ---- kernel 1: softmax + per-class errors, written into (C, P) layout ----
    err, fg = pl.pallas_call(
        _softmax_err_kernel,
        out_shape=(jax.ShapeDtypeStruct((C, P_pad), jnp.float32),
                   jax.ShapeDtypeStruct((C, P_pad), jnp.bfloat16)),
        grid=(N, n_tiles),
        in_specs=[
            pl.BlockSpec((1, C, tile_hw), lambda n, t: (n, 0, t)),   # logits
            pl.BlockSpec((1, 1, tile_hw), lambda n, t: (n, 0, t)),   # labels
        ],
        out_specs=(
            pl.BlockSpec((C, tile_hw), lambda n, t: (0, n * n_tiles + t)),
            pl.BlockSpec((C, tile_hw), lambda n, t: (0, n * n_tiles + t)),
        ),
        compiler_params=pltpu.CompilerParams(
            dimension_semantics=("parallel", "parallel")),
    )(logits, labels)

    # ---- XLA glue: per-class fg count + descending sort carrying fg ----------
    gts = jnp.sum(fg, axis=1, keepdims=True, dtype=jnp.float32)   # (C, 1) f32 acc
    # TODO(synk): the global per-class descending sort has no Pallas primitive;
    #             done with XLA's sort (f32 keys, bf16 fg permuted alongside).
    neg_err_sorted, fg_sorted = jax.lax.sort((-err, fg), dimension=1, num_keys=1)
    err_sorted = -neg_err_sorted

    # lane index 0..T-1, passed once and kept VMEM-resident (constant block idx)
    lane_idx = jax.lax.broadcasted_iota(jnp.int32, (1, tile_hw), 1)

    # ---- kernel 2: Lovász gradient scan + per-class dot product --------------
    per_class = pl.pallas_call(
        _lovasz_grad_dot_kernel,
        out_shape=jax.ShapeDtypeStruct((C, 1), jnp.float32),
        grid=(P_pad // tile_hw,),
        in_specs=[
            pl.BlockSpec((1, tile_hw), lambda t: (0, 0)),       # lane index (resident)
            pl.BlockSpec((C, tile_hw), lambda t: (0, t)),       # err_sorted (f32)
            pl.BlockSpec((C, tile_hw), lambda t: (0, t)),       # fg_sorted  (bf16)
            pl.BlockSpec((C, 1), lambda t: (0, 0)),             # gts
        ],
        out_specs=pl.BlockSpec((C, 1), lambda t: (0, 0)),
        scratch_shapes=[pltpu.VMEM((C, 1), jnp.float32)],       # cumsum carry
        compiler_params=pltpu.CompilerParams(
            dimension_semantics=("arbitrary",)),  # carried scan -> sequential grid
    )(lane_idx, err_sorted, fg_sorted, gts)

    # classes='present': average only over classes that appear in the target
    present = gts[:, 0] > 0.0
    n_present = jnp.sum(present.astype(jnp.float32))
    loss_sum = jnp.sum(jnp.where(present, per_class[:, 0], 0.0))
    return jnp.where(n_present > 0.0,
                     loss_sum / jnp.maximum(n_present, 1.0),
                     0.0)


# ---------------------------- numpy reference ---------------------------------
def _reference_lovasz_softmax(predict, target):
    pred = np.asarray(predict, np.float64)
    lab = np.asarray(target)
    N, C, H, W = pred.shape
    logits = pred.transpose(0, 2, 3, 1).reshape(-1, C)
    m = logits.max(-1, keepdims=True)
    e = np.exp(logits - m)
    probas = e / e.sum(-1, keepdims=True)
    labels = lab.reshape(-1)
    losses = []
    for c in range(C):
        fg = (labels == c).astype(np.float64)
        if fg.sum() == 0:            # classes='present'
            continue
        errors = np.abs(fg - probas[:, c])
        perm = np.argsort(-errors, kind="stable")
        errors_sorted = errors[perm]
        fg_sorted = fg[perm]
        gts = fg_sorted.sum()
        inter = gts - np.cumsum(fg_sorted)
        union = gts + np.cumsum(1.0 - fg_sorted)
        jac = 1.0 - inter / union
        grad = jac.copy()
        if grad.size > 1:
            grad[1:] = jac[1:] - jac[:-1]
        losses.append(float(np.dot(errors_sorted, grad)))
    return float(np.mean(losses)) if losses else 0.0


# ----------------------------------- main --------------------------------------
if __name__ == "__main__":
    N, C, H, W = 2, 4, 16, 16
    key = jax.random.PRNGKey(0)
    k1, k2 = jax.random.split(key)
    predict = jax.random.normal(k1, (N, C, H, W), jnp.float32)
    target = jax.random.randint(k2, (N, H, W), 0, C).astype(jnp.int32)

    loss_fn = jax.jit(lovasz_loss_softmax)
    out = jax.block_until_ready(loss_fn(predict, target))

    ref = _reference_lovasz_softmax(predict, target)
    # approx reciprocal in the softmax introduces ~1e-3-level relative error
    np.testing.assert_allclose(float(out), ref, rtol=5e-3, atol=5e-4)
    print("KERNEL_OK")
</pallas_src>

<mosaic_0001>
module attributes {stable_mosaic.version = 11 : i64} {
  func.func @_softmax_err_kernel(%arg0: i32, %arg1: i32, %arg2: memref<1x4x256xf32, #tpu.memory_space<vmem>>, %arg3: memref<1x1x256xi32, #tpu.memory_space<vmem>>, %arg4: memref<4x256xf32, #tpu.memory_space<vmem>>, %arg5: memref<4x256xbf16, #tpu.memory_space<vmem>>) attributes {dimension_semantics = [#tpu.dimension_semantics<parallel>, #tpu.dimension_semantics<parallel>], iteration_bounds = array<i64: 2, 1>, scalar_prefetch = 0 : i64, scratch_operands = 0 : i64, tpu.core_type = #tpu.core_type<tc>, window_params = [{transform_indices = @transform_0, window_bounds = array<i64: 1, 4, 256>}, {transform_indices = @transform_1, window_bounds = array<i64: 1, 1, 256>}, {transform_indices = @transform_2, window_bounds = array<i64: 4, 256>}, {transform_indices = @transform_3, window_bounds = array<i64: 4, 256>}]} {
    %c0 = arith.constant 0 : index
    %c0_0 = arith.constant 0 : index
    %c0_1 = arith.constant 0 : index
    %0 = vector.load %arg2[%c0, %c0_0, %c0_1] : memref<1x4x256xf32, #tpu.memory_space<vmem>>, vector<1x4x256xf32>
    %1 = vector.shape_cast %0 : vector<1x4x256xf32> to vector<4x256xf32>
    %c0_2 = arith.constant 0 : index
    %c0_3 = arith.constant 0 : index
    %c0_4 = arith.constant 0 : index
    %2 = vector.load %arg3[%c0_2, %c0_3, %c0_4] : memref<1x1x256xi32, #tpu.memory_space<vmem>>, vector<1x1x256xi32>
    %3 = vector.shape_cast %2 : vector<1x1x256xi32> to vector<1x256xi32>
    %cst = arith.constant dense<0xFF800000> : vector<256xf32>
    %4 = vector.multi_reduction <maximumf>, %1, %cst [0] : vector<4x256xf32> to vector<256xf32>
    %5 = vector.shape_cast %4 : vector<256xf32> to vector<1x256xf32>
    %6 = vector.broadcast %5 : vector<1x256xf32> to vector<4x256xf32>
    %7 = arith.subf %1, %6 : vector<4x256xf32>
    %8 = math.exp %7 : vector<4x256xf32>
    %cst_5 = arith.constant dense<0.000000e+00> : vector<256xf32>
    %9 = vector.multi_reduction <add>, %8, %cst_5 [0] : vector<4x256xf32> to vector<256xf32>
    %10 = vector.shape_cast %9 : vector<256xf32> to vector<1x256xf32>
    %11 = tpu.reciprocal %10 {approx = true} : vector<1x256xf32> -> vector<1x256xf32>
    %12 = vector.broadcast %11 : vector<1x256xf32> to vector<4x256xf32>
    %13 = arith.mulf %8, %12 : vector<4x256xf32>
    %14 = tpu.iota {dimensions = array<i32: 0>} : vector<4x256xi32>
    %15 = vector.broadcast %3 : vector<1x256xi32> to vector<4x256xi32>
    %16 = arith.cmpi eq, %14, %15 : vector<4x256xi32>
    %17 = arith.extui %16 : vector<4x256xi1> to vector<4x256xi32>
    %18 = arith.sitofp %17 : vector<4x256xi32> to vector<4x256xf32>
    %c0_i32 = arith.constant 0 : i32
    %19 = vector.broadcast %c0_i32 : i32 to vector<1x256xi32>
    %20 = arith.cmpi sge, %3, %19 : vector<1x256xi32>
    %21 = arith.subf %18, %13 : vector<4x256xf32>
    %22 = math.absf %21 : vector<4x256xf32>
    %cst_6 = arith.constant 0.000000e+00 : f32
    %23 = vector.shape_cast %20 : vector<1x256xi1> to vector<1x256xi1>
    %24 = vector.broadcast %23 : vector<1x256xi1> to vector<4x256xi1>
    %25 = vector.broadcast %cst_6 : f32 to vector<4x256xf32>
    %26 = arith.select %24, %22, %25 : vector<4x256xi1>, vector<4x256xf32>
    %c0_7 = arith.constant 0 : index
    %c0_8 = arith.constant 0 : index
    %27 = vector.load %arg4[%c0_7, %c0_8] : memref<4x256xf32, #tpu.memory_space<vmem>>, vector<4x256xf32>
    tpu.vector_store %arg4[%c0_7, %c0_8], %26 {strides = array<i32>} : memref<4x256xf32, #tpu.memory_space<vmem>>, vector<4x256xf32>,
    %28 = arith.truncf %18 : vector<4x256xf32> to vector<4x256xbf16>
    %c0_9 = arith.constant 0 : index
    %c0_10 = arith.constant 0 : index
    %29 = vector.load %arg5[%c0_9, %c0_10] : memref<4x256xbf16, #tpu.memory_space<vmem>>, vector<4x256xbf16>
    tpu.vector_store %arg5[%c0_9, %c0_10], %28 {strides = array<i32>} : memref<4x256xbf16, #tpu.memory_space<vmem>>, vector<4x256xbf16>,
    return
  }
  func.func @transform_0(%arg0: i32, %arg1: i32) -> (i32, i32, i32) {
    %c0_i32 = arith.constant 0 : i32
    %c0_i32_0 = arith.constant 0 : i32
    return %arg0, %c0_i32, %arg1 : i32, i32, i32
  }
  func.func @transform_1(%arg0: i32, %arg1: i32) -> (i32, i32, i32) {
    %c0_i32 = arith.constant 0 : i32
    %c0_i32_0 = arith.constant 0 : i32
    return %arg0, %c0_i32, %arg1 : i32, i32, i32
  }
  func.func @transform_2(%arg0: i32, %arg1: i32) -> (i32, i32) {
    %c1_i32 = arith.constant 1 : i32
    %0 = arith.muli %arg0, %c1_i32 : i32
    %1 = arith.addi %0, %arg1 : i32
    %c0_i32 = arith.constant 0 : i32
    %c0_i32_0 = arith.constant 0 : i32
    return %c0_i32, %1 : i32, i32
  }
  func.func @transform_3(%arg0: i32, %arg1: i32) -> (i32, i32) {
    %c1_i32 = arith.constant 1 : i32
    %0 = arith.muli %arg0, %c1_i32 : i32
    %1 = arith.addi %0, %arg1 : i32
    %c0_i32 = arith.constant 0 : i32
    %c0_i32_0 = arith.constant 0 : i32
    return %c0_i32, %1 : i32, i32
  }
}

module attributes {stable_mosaic.version = 11 : i64} {
  func.func @_lovasz_grad_dot_kernel(%arg0: i32, %arg1: memref<1x256xi32, #tpu.memory_space<vmem>>, %arg2: memref<4x256xf32, #tpu.memory_space<vmem>>, %arg3: memref<4x256xbf16, #tpu.memory_space<vmem>>, %arg4: memref<4x1xf32, #tpu.memory_space<vmem>>, %arg5: memref<4x1xf32, #tpu.memory_space<vmem>>, %arg6: memref<4x1xf32, #tpu.memory_space<vmem>>) attributes {dimension_semantics = [#tpu.dimension_semantics<arbitrary>], iteration_bounds = array<i64: 2>, scalar_prefetch = 0 : i64, scratch_operands = 1 : i64, tpu.core_type = #tpu.core_type<tc>, window_params = [{pipeline_mode = #tpu.pipeline_mode<synchronous>, transform_indices = @transform_0, window_bounds = array<i64: 1, 256>}, {transform_indices = @transform_1, window_bounds = array<i64: 4, 256>}, {transform_indices = @transform_2, window_bounds = array<i64: 4, 256>}, {pipeline_mode = #tpu.pipeline_mode<synchronous>, transform_indices = @transform_3, window_bounds = array<i64: 4, 1>}, {pipeline_mode = #tpu.pipeline_mode<synchronous>, transform_indices = @transform_4, window_bounds = array<i64: 4, 1>}]} {
    %c0_i32 = arith.constant 0 : i32
    %0 = arith.cmpi eq, %arg0, %c0_i32 : i32
    %1 = arith.extui %0 : i1 to i32
    %c0_i32_0 = arith.constant 0 : i32
    %2 = arith.cmpi ne, %1, %c0_i32_0 : i32
    scf.if %2 {
      %cst_37 = arith.constant 0.000000e+00 : f32
      %113 = vector.broadcast %cst_37 : f32 to vector<4x1xf32>
      %c0_38 = arith.constant 0 : index
      %c0_39 = arith.constant 0 : index
      %114 = vector.load %arg5[%c0_38, %c0_39] : memref<4x1xf32, #tpu.memory_space<vmem>>, vector<4x1xf32>
      tpu.vector_store %arg5[%c0_38, %c0_39], %113 {strides = array<i32>} : memref<4x1xf32, #tpu.memory_space<vmem>>, vector<4x1xf32>,
      %cst_40 = arith.constant 0.000000e+00 : f32
      %115 = vector.broadcast %cst_40 : f32 to vector<4x1xf32>
      %c0_41 = arith.constant 0 : index
      %c0_42 = arith.constant 0 : index
      %116 = vector.load %arg6[%c0_41, %c0_42] : memref<4x1xf32, #tpu.memory_space<vmem>>, vector<4x1xf32>
      tpu.vector_store %arg6[%c0_41, %c0_42], %115 {strides = array<i32>} : memref<4x1xf32, #tpu.memory_space<vmem>>, vector<4x1xf32>,
    } else {
    }
    %c0 = arith.constant 0 : index
    %c0_1 = arith.constant 0 : index
    %3 = vector.load %arg3[%c0, %c0_1] : memref<4x256xbf16, #tpu.memory_space<vmem>>, vector<4x256xbf16>
    %4 = arith.extf %3 : vector<4x256xbf16> to vector<4x256xf32>
    %c0_2 = arith.constant 0 : index
    %c0_3 = arith.constant 0 : index
    %5 = vector.load %arg2[%c0_2, %c0_3] : memref<4x256xf32, #tpu.memory_space<vmem>>, vector<4x256xf32>
    %c0_4 = arith.constant 0 : index
    %c0_5 = arith.constant 0 : index
    %6 = vector.load %arg1[%c0_4, %c0_5] : memref<1x256xi32, #tpu.memory_space<vmem>>, vector<1x256xi32>
    %c1_i32 = arith.constant 1 : i32
    %7 = tpu.dynamic_rotate %4 by %c1_i32 dim 1 : vector<4x256xf32>, i32 -> vector<4x256xf32>
    %c1_i32_6 = arith.constant 1 : i32
    %8 = vector.broadcast %c1_i32_6 : i32 to vector<1x256xi32>
    %9 = arith.cmpi sge, %6, %8 : vector<1x256xi32>
    %cst = arith.constant 0.000000e+00 : f32
    %10 = vector.shape_cast %9 : vector<1x256xi1> to vector<1x256xi1>
    %11 = vector.broadcast %10 : vector<1x256xi1> to vector<4x256xi1>
    %12 = vector.broadcast %cst : f32 to vector<4x256xf32>
    %13 = arith.select %11, %7, %12 : vector<4x256xi1>, vector<4x256xf32>
    %14 = arith.addf %4, %13 : vector<4x256xf32>
    %c2_i32 = arith.constant 2 : i32
    %15 = tpu.dynamic_rotate %14 by %c2_i32 dim 1 : vector<4x256xf32>, i32 -> vector<4x256xf32>
    %c2_i32_7 = arith.constant 2 : i32
    %16 = vector.broadcast %c2_i32_7 : i32 to vector<1x256xi32>
    %17 = arith.cmpi sge, %6, %16 : vector<1x256xi32>
    %cst_8 = arith.constant 0.000000e+00 : f32
    %18 = vector.shape_cast %17 : vector<1x256xi1> to vector<1x256xi1>
    %19 = vector.broadcast %18 : vector<1x256xi1> to vector<4x256xi1>
    %20 = vector.broadcast %cst_8 : f32 to vector<4x256xf32>
    %21 = arith.select %19, %15, %20 : vector<4x256xi1>, vector<4x256xf32>
    %22 = arith.addf %14, %21 : vector<4x256xf32>
    %c4_i32 = arith.constant 4 : i32
    %23 = tpu.dynamic_rotate %22 by %c4_i32 dim 1 : vector<4x256xf32>, i32 -> vector<4x256xf32>
    %c4_i32_9 = arith.constant 4 : i32
    %24 = vector.broadcast %c4_i32_9 : i32 to vector<1x256xi32>
    %25 = arith.cmpi sge, %6, %24 : vector<1x256xi32>
    %cst_10 = arith.constant 0.000000e+00 : f32
    %26 = vector.shape_cast %25 : vector<1x256xi1> to vector<1x256xi1>
    %27 = vector.broadcast %26 : vector<1x256xi1> to vector<4x256xi1>
    %28 = vector.broadcast %cst_10 : f32 to vector<4x256xf32>
    %29 = arith.select %27, %23, %28 : vector<4x256xi1>, vector<4x256xf32>
    %30 = arith.addf %22, %29 : vector<4x256xf32>
    %c8_i32 = arith.constant 8 : i32
    %31 = tpu.dynamic_rotate %30 by %c8_i32 dim 1 : vector<4x256xf32>, i32 -> vector<4x256xf32>
    %c8_i32_11 = arith.constant 8 : i32
    %32 = vector.broadcast %c8_i32_11 : i32 to vector<1x256xi32>
    %33 = arith.cmpi sge, %6, %32 : vector<1x256xi32>
    %cst_12 = arith.constant 0.000000e+00 : f32
    %34 = vector.shape_cast %33 : vector<1x256xi1> to vector<1x256xi1>
    %35 = vector.broadcast %34 : vector<1x256xi1> to vector<4x256xi1>
    %36 = vector.broadcast %cst_12 : f32 to vector<4x256xf32>
    %37 = arith.select %35, %31, %36 : vector<4x256xi1>, vector<4x256xf32>
    %38 = arith.addf %30, %37 : vector<4x256xf32>
    %c16_i32 = arith.constant 16 : i32
    %39 = tpu.dynamic_rotate %38 by %c16_i32 dim 1 : vector<4x256xf32>, i32 -> vector<4x256xf32>
    %c16_i32_13 = arith.constant 16 : i32
    %40 = vector.broadcast %c16_i32_13 : i32 to vector<1x256xi32>
    %41 = arith.cmpi sge, %6, %40 : vector<1x256xi32>
    %cst_14 = arith.constant 0.000000e+00 : f32
    %42 = vector.shape_cast %41 : vector<1x256xi1> to vector<1x256xi1>
    %43 = vector.broadcast %42 : vector<1x256xi1> to vector<4x256xi1>
    %44 = vector.broadcast %cst_14 : f32 to vector<4x256xf32>
    %45 = arith.select %43, %39, %44 : vector<4x256xi1>, vector<4x256xf32>
    %46 = arith.addf %38, %45 : vector<4x256xf32>
    %c32_i32 = arith.constant 32 : i32
    %47 = tpu.dynamic_rotate %46 by %c32_i32 dim 1 : vector<4x256xf32>, i32 -> vector<4x256xf32>
    %c32_i32_15 = arith.constant 32 : i32
    %48 = vector.broadcast %c32_i32_15 : i32 to vector<1x256xi32>
    %49 = arith.cmpi sge, %6, %48 : vector<1x256xi32>
    %cst_16 = arith.constant 0.000000e+00 : f32
    %50 = vector.shape_cast %49 : vector<1x256xi1> to vector<1x256xi1>
    %51 = vector.broadcast %50 : vector<1x256xi1> to vector<4x256xi1>
    %52 = vector.broadcast %cst_16 : f32 to vector<4x256xf32>
    %53 = arith.select %51, %47, %52 : vector<4x256xi1>, vector<4x256xf32>
    %54 = arith.addf %46, %53 : vector<4x256xf32>
    %c64_i32 = arith.constant 64 : i32
    %55 = tpu.dynamic_rotate %54 by %c64_i32 dim 1 : vector<4x256xf32>, i32 -> vector<4x256xf32>
    %c64_i32_17 = arith.constant 64 : i32
    %56 = vector.broadcast %c64_i32_17 : i32 to vector<1x256xi32>
    %57 = arith.cmpi sge, %6, %56 : vector<1x256xi32>
    %cst_18 = arith.constant 0.000000e+00 : f32
    %58 = vector.shape_cast %57 : vector<1x256xi1> to vector<1x256xi1>
    %59 = vector.broadcast %58 : vector<1x256xi1> to vector<4x256xi1>
    %60 = vector.broadcast %cst_18 : f32 to vector<4x256xf32>
    %61 = arith.select %59, %55, %60 : vector<4x256xi1>, vector<4x256xf32>
    %62 = arith.addf %54, %61 : vector<4x256xf32>
    %c128_i32 = arith.constant 128 : i32
    %63 = tpu.dynamic_rotate %62 by %c128_i32 dim 1 : vector<4x256xf32>, i32 -> vector<4x256xf32>
    %c128_i32_19 = arith.constant 128 : i32
    %64 = vector.broadcast %c128_i32_19 : i32 to vector<1x256xi32>
    %65 = arith.cmpi sge, %6, %64 : vector<1x256xi32>
    %cst_20 = arith.constant 0.000000e+00 : f32
    %66 = vector.shape_cast %65 : vector<1x256xi1> to vector<1x256xi1>
    %67 = vector.broadcast %66 : vector<1x256xi1> to vector<4x256xi1>
    %68 = vector.broadcast %cst_20 : f32 to vector<4x256xf32>
    %69 = arith.select %67, %63, %68 : vector<4x256xi1>, vector<4x256xf32>
    %70 = arith.addf %62, %69 : vector<4x256xf32>
    %c0_21 = arith.constant 0 : index
    %c0_22 = arith.constant 0 : index
    %71 = vector.load %arg6[%c0_21, %c0_22] : memref<4x1xf32, #tpu.memory_space<vmem>>, vector<4x1xf32>
    %72 = vector.broadcast %71 : vector<4x1xf32> to vector<4x256xf32>
    %73 = arith.addf %72, %70 : vector<4x256xf32>
    %74 = arith.subf %73, %4 : vector<4x256xf32>
    %c256_i32 = arith.constant 256 : i32
    %75 = arith.muli %arg0, %c256_i32 : i32
    %76 = vector.broadcast %75 : i32 to vector<1x256xi32>
    %77 = arith.addi %6, %76 : vector<1x256xi32>
    %c1_i32_23 = arith.constant 1 : i32
    %78 = vector.broadcast %c1_i32_23 : i32 to vector<1x256xi32>
    %79 = arith.addi %77, %78 : vector<1x256xi32>
    %80 = arith.sitofp %79 : vector<1x256xi32> to vector<1x256xf32>
    %c0_24 = arith.constant 0 : index
    %c0_25 = arith.constant 0 : index
    %81 = vector.load %arg4[%c0_24, %c0_25] : memref<4x1xf32, #tpu.memory_space<vmem>>, vector<4x1xf32>
    %82 = vector.broadcast %80 : vector<1x256xf32> to vector<4x256xf32>
    %83 = arith.subf %82, %73 : vector<4x256xf32>
    %84 = vector.broadcast %81 : vector<4x1xf32> to vector<4x256xf32>
    %85 = arith.addf %84, %83 : vector<4x256xf32>
    %cst_26 = arith.constant 1.000000e+00 : f32
    %86 = vector.broadcast %cst_26 : f32 to vector<1x256xf32>
    %87 = arith.subf %80, %86 : vector<1x256xf32>
    %88 = vector.broadcast %87 : vector<1x256xf32> to vector<4x256xf32>
    %89 = arith.subf %88, %74 : vector<4x256xf32>
    %90 = vector.broadcast %81 : vector<4x1xf32> to vector<4x256xf32>
    %91 = arith.addf %90, %89 : vector<4x256xf32>
    %cst_27 = arith.constant 9.99999997E-7 : f32
    %92 = vector.broadcast %cst_27 : f32 to vector<4x256xf32>
    %93 = arith.maximumf %91, %92 : vector<4x256xf32>
    %94 = vector.broadcast %81 : vector<4x1xf32> to vector<4x256xf32>
    %95 = arith.subf %94, %73 : vector<4x256xf32>
    %96 = arith.divf %95, %85 : vector<4x256xf32>
    %cst_28 = arith.constant 1.000000e+00 : f32
    %97 = vector.broadcast %cst_28 : f32 to vector<4x256xf32>
    %98 = arith.subf %97, %96 : vector<4x256xf32>
    %99 = vector.broadcast %81 : vector<4x1xf32> to vector<4x256xf32>
    %100 = arith.subf %99, %74 : vector<4x256xf32>
    %101 = arith.divf %100, %93 : vector<4x256xf32>
    %cst_29 = arith.constant 1.000000e+00 : f32
    %102 = vector.broadcast %cst_29 : f32 to vector<4x256xf32>
    %103 = arith.subf %102, %101 : vector<4x256xf32>
    %104 = arith.subf %98, %103 : vector<4x256xf32>
    %c0_30 = arith.constant 0 : index
    %c0_31 = arith.constant 0 : index
    %105 = vector.load %arg5[%c0_30, %c0_31] : memref<4x1xf32, #tpu.memory_space<vmem>>, vector<4x1xf32>
    %106 = arith.mulf %5, %104 : vector<4x256xf32>
    %cst_32 = arith.constant dense<0.000000e+00> : vector<4xf32>
    %107 = vector.multi_reduction <add>, %106, %cst_32 [1] : vector<4x256xf32> to vector<4xf32>
    %108 = vector.shape_cast %107 : vector<4xf32> to vector<4x1xf32>
    %109 = arith.addf %105, %108 : vector<4x1xf32>
    %c0_33 = arith.constant 0 : index
    %c0_34 = arith.constant 0 : index
    %110 = vector.load %arg5[%c0_33, %c0_34] : memref<4x1xf32, #tpu.memory_space<vmem>>, vector<4x1xf32>
    tpu.vector_store %arg5[%c0_33, %c0_34], %109 {strides = array<i32>} : memref<4x1xf32, #tpu.memory_space<vmem>>, vector<4x1xf32>,
    %111 = vector.extract_strided_slice %73 {offsets = [0, 255], sizes = [4, 1], strides = [1, 1]} : vector<4x256xf32> to vector<4x1xf32>
    %c0_35 = arith.constant 0 : index
    %c0_36 = arith.constant 0 : index
    %112 = vector.load %arg6[%c0_35, %c0_36] : memref<4x1xf32, #tpu.memory_space<vmem>>, vector<4x1xf32>
    tpu.vector_store %arg6[%c0_35, %c0_36], %111 {strides = array<i32>} : memref<4x1xf32, #tpu.memory_space<vmem>>, vector<4x1xf32>,
    return
  }
  func.func @transform_0(%arg0: i32) -> (i32, i32) {
    %c0_i32 = arith.constant 0 : i32
    %c0_i32_0 = arith.constant 0 : i32
    %c0_i32_1 = arith.constant 0 : i32
    return %c0_i32, %c0_i32_0 : i32, i32
  }
  func.func @transform_1(%arg0: i32) -> (i32, i32) {
    %c0_i32 = arith.constant 0 : i32
    %c0_i32_0 = arith.constant 0 : i32
    return %c0_i32, %arg0 : i32, i32
  }
  func.func @transform_2(%arg0: i32) -> (i32, i32) {
    %c0_i32 = arith.constant 0 : i32
    %c0_i32_0 = arith.constant 0 : i32
    return %c0_i32, %arg0 : i32, i32
  }
  func.func @transform_3(%arg0: i32) -> (i32, i32) {
    %c0_i32 = arith.constant 0 : i32
    %c0_i32_0 = arith.constant 0 : i32
    %c0_i32_1 = arith.constant 0 : i32
    return %c0_i32, %c0_i32_0 : i32, i32
  }
  func.func @transform_4(%arg0: i32) -> (i32, i32) {
    %c0_i32 = arith.constant 0 : i32
    %c0_i32_0 = arith.constant 0 : i32
    %c0_i32_1 = arith.constant 0 : i32
    return %c0_i32, %c0_i32_0 : i32, i32
  }
}

</mosaic_0001>

<llo_original>
// kernel: neg.2
$region0: #{neg.2}
  #allocation0 [shape = 's32[1]{0}', space=sflag, size = 0x4, scoped, tag = 'scoped memory for neg.2']
  %s0 = inlined_call_operand.vmem [shape: f32[4,512], index: 0, kind: input, shape index: {}]
  %s1 = inlined_call_operand.vmem [shape: f32[4,512], index: 1, kind: output, shape index: {}]
  %v2 = vld [vmem:[%s0] sm:$0xf]
  %3 = xla_tuple %v2
  %4 = xla_tuple %3
  %v5 = vxor.u32 %v2, 2147483648
  %6 = xla_tuple %v5
  %7 = vst [vmem:[%s1] sm:$0xf] %v5
  %s8 = scalar_lea.vmem %s0, 4
  %v9 = vld [vmem:[%s8] sm:$0xf]
  %10 = xla_tuple %v9
  %11 = xla_tuple %10
  %v12 = vxor.u32 %v9, 2147483648
  %13 = xla_tuple %v12
  %s14 = scalar_lea.vmem %s1, 4
  %15 = vst [vmem:[%s14] sm:$0xf] %v12
  %s16 = scalar_lea.vmem %s0, 8
  %v17 = vld [vmem:[%s16] sm:$0xf]
  %18 = xla_tuple %v17
  %19 = xla_tuple %18
  %v20 = vxor.u32 %v17, 2147483648
  %21 = xla_tuple %v20
  %s22 = scalar_lea.vmem %s1, 8
  %23 = vst [vmem:[%s22] sm:$0xf] %v20
  %s24 = scalar_lea.vmem %s0, 12
  %v25 = vld [vmem:[%s24] sm:$0xf]
  %26 = xla_tuple %v25
  %27 = xla_tuple %26
  %v28 = vxor.u32 %v25, 2147483648
  %29 = xla_tuple %v28
  %s30 = scalar_lea.vmem %s1, 12
  %31 = vst [vmem:[%s30] sm:$0xf] %v28

// kernel: lovasz_loss_softmax.2
$region0: #{lovasz_loss_softmax.2}
  #allocation0 [shape = 'u32[]', space=smem, size = 0x4, offset = 0x4, fixed_abs, tag = 'smem constant byte address 0x4 - core index']
  #allocation1 [shape = 'u32[144,128]{1,0:T(1,128)}', space=vmem, size = 0x12000, scoped, tag = 'internal scratch']
  %s0 = inlined_call_operand.vmem [shape: f32[2,4,256], index: 0, kind: input, shape index: {}]
  %s1 = inlined_call_operand.vmem [shape: s32[2,1,256], index: 1, kind: input, shape index: {}]
  %s2 = inlined_call_operand.vmem [shape: f32[4,512], index: 2, kind: output, shape index: {0}]
  %s3 = inlined_call_operand.vmem [shape: bf16[4,512], index: 3, kind: output, shape index: {1}]
  %4 = xla_tuple %s2, %s3
  %s5 = sld [smem:[#allocation0]]
  $region49: #{lovasz_loss_softmax.2} parent=0
    _
  %s7 = ssub.s32 1, %s5
  %s8 = scalar_select 0, %s7, %s5
  loop: start=0, step=1, limit=4
  $region2: #{lovasz_loss_softmax.2} parent=0 // loop_pre_header
    _
  $region3: #{lovasz_loss_softmax.2} parent=0 // loop_header
    %s10 = sphi 0, %s14
    %p11 = scmp.ge.s32.totalorder %s10, 4
    %s17 = sphi 0, %s29
    %s18 = sphi 0, %s25
    %s19 = sphi 0, %s17
    %s20 = sphi 0, %s18
    %s21 = sphi 0, %s19
    %s22 = sphi 0, %s20
    %s34 = sphi 0, %s36
    %s37 = sphi 0, %s34
    %s38 = sphi 0, %s37
    %s54 = sphi 0, %s38
    %s62 = sphi 0, %s64
    %s65 = sphi 0, %s62
    %s66 = sphi 0, %s65
    %s82 = sphi 0, %s66
    %s90 = sphi 0, %s92
    %s93 = sphi 0, %s90
    %s94 = sphi 0, %s93
    %s110 = sphi 0, %s94
    %s118 = sphi 0, %s120
    %s121 = sphi 0, %s118
    %s122 = sphi 0, %s121
    %s138 = sphi 0, %s122
  $region4: #{lovasz_loss_softmax.2} parent=0 // loop_header_branch
    %13 = sbr.rel (%p11) target = $region8
  $region5: #{lovasz_loss_softmax.2} parent=0 // loop_body
    %s15 = ssub.s32 %s10, 1
    %s16 = ssub.s32 %s10, 2
    %s23 = sadd.s32 1, %s18
    %p24 = scmp.ge.s32.totalorder %s23, 1
    %s25 = scalar_select %p24, 0, %s23
    %s26 = sadd.s32 1, %s17
    %s27 = scalar_select %p24, %s26, %s17
    %p28 = scmp.ge.s32.totalorder %s27, 2
    %s29 = scalar_select %p28, 0, %s27
    %s30 = ssub.s32 %s17, %s29
    %s31 = ssub.s32 %s18, %s25
    %s32 = sor.u32 %s30, %s31
    %p33 = scmp.eq.s32.totalorder %s32, 0
    %s35 = sadd.s32 %s34, 1
    %s36 = scalar_select %p33, %s34, %s35
    %p39 = pneg %p33
    %p40 = scmp.eq.s32.totalorder %s10, 1
    %p41 = por %p39, %p40
    %p42 = scmp.ne.s32.totalorder %s34, %s37
    %p43 = scmp.eq.s32.totalorder %s10, 0
    %p44 = por %p42, %p43
    %p45 = scmp.ne.s32.totalorder %s34, %s37
    %p46 = scmp.eq.s32.totalorder %s15, 1
    %p47 = por %p45, %p46
    %p48 = scmp.ne.s32.totalorder %s37, %s38
    %p49 = scmp.eq.s32.totalorder %s15, 0
    %p50 = por %p48, %p49
    %p51 = scmp.ne.s32.totalorder %s37, %s38
    %p52 = scmp.eq.s32.totalorder %s16, 1
    %p53 = por %p51, %p52
    %p55 = scmp.ne.s32.totalorder %s38, %s54
    %p56 = scmp.eq.s32.totalorder %s16, 0
    %p57 = por %p55, %p56
    %s58 = ssub.s32 %s17, %s29
    %s59 = ssub.s32 %s18, %s25
    %s60 = sor.u32 %s58, %s59
    %p61 = scmp.eq.s32.totalorder %s60, 0
    %s63 = sadd.s32 %s62, 1
    %s64 = scalar_select %p61, %s62, %s63
    %p67 = pneg %p61
    %p68 = scmp.eq.s32.totalorder %s10, 1
    %p69 = por %p67, %p68
    %p70 = scmp.ne.s32.totalorder %s62, %s65
    %p71 = scmp.eq.s32.totalorder %s10, 0
    %p72 = por %p70, %p71
    %p73 = scmp.ne.s32.totalorder %s62, %s65
    %p74 = scmp.eq.s32.totalorder %s15, 1
    %p75 = por %p73, %p74
    %p76 = scmp.ne.s32.totalorder %s65, %s66
    %p77 = scmp.eq.s32.totalorder %s15, 0
    %p78 = por %p76, %p77
    %p79 = scmp.ne.s32.totalorder %s65, %s66
    %p80 = scmp.eq.s32.totalorder %s16, 1
    %p81 = por %p79, %p80
    %p83 = scmp.ne.s32.totalorder %s66, %s82
    %p84 = scmp.eq.s32.totalorder %s16, 0
    %p85 = por %p83, %p84
    %s86 = sadd.s32 %s17, %s18
    %s87 = sadd.s32 %s29, %s25
    %s88 = ssub.s32 %s86, %s87
    %p89 = scmp.eq.s32.totalorder %s88, 0
    %s91 = sadd.s32 %s90, 1
    %s92 = scalar_select %p89, %s90, %s91
    %p95 = pneg %p89
    %p96 = scmp.eq.s32.totalorder %s10, 1
    %p97 = por %p95, %p96
    %p98 = scmp.ne.s32.totalorder %s90, %s93
    %p99 = scmp.eq.s32.totalorder %s10, 0
    %p100 = por %p98, %p99
    %p101 = scmp.ne.s32.totalorder %s90, %s93
    %p102 = scmp.eq.s32.totalorder %s15, 1
    %p103 = por %p101, %p102
    %p104 = scmp.ne.s32.totalorder %s93, %s94
    %p105 = scmp.eq.s32.totalorder %s15, 0
    %p106 = por %p104, %p105
    %p107 = scmp.ne.s32.totalorder %s93, %s94
    %p108 = scmp.eq.s32.totalorder %s16, 1
    %p109 = por %p107, %p108
    %p111 = scmp.ne.s32.totalorder %s94, %s110
    %p112 = scmp.eq.s32.totalorder %s16, 0
    %p113 = por %p111, %p112
    %s114 = sadd.s32 %s17, %s18
    %s115 = sadd.s32 %s29, %s25
    %s116 = ssub.s32 %s114, %s115
    %p117 = scmp.eq.s32.totalorder %s116, 0
    %s119 = sadd.s32 %s118, 1
    %s120 = scalar_select %p117, %s118, %s119
    %p123 = pneg %p117
    %p124 = scmp.eq.s32.totalorder %s10, 1
    %p125 = por %p123, %p124
    %p126 = scmp.ne.s32.totalorder %s118, %s121
    %p127 = scmp.eq.s32.totalorder %s10, 0
    %p128 = por %p126, %p127
    %p129 = scmp.ne.s32.totalorder %s118, %s121
    %p130 = scmp.eq.s32.totalorder %s15, 1
    %p131 = por %p129, %p130
    %p132 = scmp.ne.s32.totalorder %s121, %s122
    %p133 = scmp.eq.s32.totalorder %s15, 0
    %p134 = por %p132, %p133
    %p135 = scmp.ne.s32.totalorder %s121, %s122
    %p136 = scmp.eq.s32.totalorder %s16, 1
    %p137 = por %p135, %p136
    %p139 = scmp.ne.s32.totalorder %s122, %s138
    %p140 = scmp.eq.s32.totalorder %s16, 0
    %p141 = por %p139, %p140
    %p142 = scmp.le.s32.totalorder 1, %s10
    %p143 = scmp.lt.s32.totalorder %s10, 3
    %p144 = pnand %p142, %p143
    %p145 = pneg %p144
    // Predicated region
    $region9: #{lovasz_loss_softmax.2} parent=5 // pred_check
      _
    $region10: #{lovasz_loss_softmax.2} parent=5 // pred_check_branch
      %147 = sbr.rel (%p144) target = $region12
    $region11: #{lovasz_loss_softmax.2} parent=5 // pred_region
      %s148 = ssub.s32 %s10, 1
    $region12: #{lovasz_loss_softmax.2} parent=5 // pred_fallthru
      _
    %p149 = scmp.lt.s32.totalorder %s10, 2
    // Predicated region
    $region13: #{lovasz_loss_softmax.2} parent=5 // pred_check
      %p150 = pneg %p149
    $region14: #{lovasz_loss_softmax.2} parent=5 // pred_check_branch
      %152 = sbr.rel (%p150) target = $region16
    $region15: #{lovasz_loss_softmax.2} parent=5 // pred_region
      // Predicated region
      $region17: #{lovasz_loss_softmax.2} parent=15 // pred_check
        %p153 = pneg %p44
      $region18: #{lovasz_loss_softmax.2} parent=15 // pred_check_branch
        %155 = sbr.rel (%p153) target = $region20
      $region19: #{lovasz_loss_softmax.2} parent=15 // pred_region
        %s156 = smul.u32 2, %s18
        %p157 = scmp.lt.s32.totalorder %s17, 1
        %s158 = scalar_select %p157, %s17, 1
        %p159 = scmp.lt.s32.totalorder %s156, 1
        %s160 = scalar_select %p159, %s156, 1
        %s161 = smul.addr %s158, 2
        %s162 = sadd.s32 %s160, %s161
        %s163 = smul.addr %s162, 4
        %s164 = scalar_lea.vmem %s0, %s163
        %s165 = smul.u32 2, %s18
      $region20: #{lovasz_loss_softmax.2} parent=15 // pred_fallthru
        _
      // Predicated region
      $region21: #{lovasz_loss_softmax.2} parent=15 // pred_check
        %p166 = pneg %p72
      $region22: #{lovasz_loss_softmax.2} parent=15 // pred_check_branch
        %168 = sbr.rel (%p166) target = $region24
      $region23: #{lovasz_loss_softmax.2} parent=15 // pred_region
        %s169 = smul.u32 2, %s18
        %p170 = scmp.lt.s32.totalorder %s17, 1
        %s171 = scalar_select %p170, %s17, 1
        %p172 = scmp.lt.s32.totalorder %s169, 1
        %s173 = scalar_select %p172, %s169, 1
        %s174 = smul.addr %s171, 2
        %s175 = sadd.s32 %s173, %s174
        %s176 = scalar_lea.vmem %s1, %s175
        %s177 = smul.u32 2, %s18
      $region24: #{lovasz_loss_softmax.2} parent=15 // pred_fallthru
        _
    $region16: #{lovasz_loss_softmax.2} parent=5 // pred_fallthru
      _
    %p178 = scmp.le.s32.totalorder 1, %s10
    %p179 = scmp.lt.s32.totalorder %s10, 3
    %p180 = pnand %p178, %p179
    %p181 = pneg %p180
    // Predicated region
    $region25: #{lovasz_loss_softmax.2} parent=5 // pred_check
      _
    $region26: #{lovasz_loss_softmax.2} parent=5 // pred_check_branch
      %183 = sbr.rel (%p180) target = $region28
    $region27: #{lovasz_loss_softmax.2} parent=5 // pred_region
      %s184 = ssub.s32 %s10, 1
      %s185 = smul.u32 2, %s20
      %p186 = scmp.lt.s32.totalorder %s19, 1
      %s187 = scalar_select %p186, %s19, 1
      %p188 = scmp.lt.s32.totalorder %s185, 1
      %s189 = scalar_select %p188, %s185, 1
      %s190 = smul.addr %s187, 2
      %s191 = sadd.s32 %s189, %s190
      %s192 = smul.addr %s191, 4
      %s193 = scalar_lea.vmem %s0, %s192
      %p194 = pneg %p50
      %p195 = pneg %p47
      %s196 = smul.u32 2, %s20
      %p197 = scmp.lt.s32.totalorder %s19, 1
      %s198 = scalar_select %p197, %s19, 1
      %p199 = scmp.lt.s32.totalorder %s196, 1
      %s200 = scalar_select %p199, %s196, 1
      %s201 = smul.addr %s198, 2
      %s202 = sadd.s32 %s200, %s201
      %s203 = scalar_lea.vmem %s1, %s202
      %p204 = pneg %p78
      %p205 = pneg %p75
      %p206 = pneg %p106
      %p207 = pneg %p103
      %s208 = sadd.s32 %s19, %s20
      %s209 = smul.u32 2, %s208
      %p210 = scmp.lt.s32.totalorder %s209, 3
      %s211 = scalar_select %p210, %s209, 3
      %s212 = smul.addr %s211, 4
      %s213 = scalar_lea.vmem %s2, %s212
      %p214 = pneg %p134
      %p215 = pneg %p131
      %s216 = sadd.s32 %s19, %s20
      %s217 = smul.u32 2, %s216
      %p218 = scmp.lt.s32.totalorder %s217, 3
      %s219 = scalar_select %p218, %s217, 3
      %s220 = smul.addr %s219, 2
      %s221 = scalar_lea.vmem %s3, %s220
      %s222 = smul.u32 2, %s20
      %p223 = scmp.lt.s32.totalorder %s19, 1
      %s224 = scalar_select %p223, %s19, 1
      %p225 = scmp.lt.s32.totalorder %s222, 1
      %s226 = scalar_select %p225, %s222, 1
      %s227 = smul.addr %s224, 2
      %s228 = sadd.s32 %s226, %s227
      %s229 = smul.addr %s228, 4
      %s230 = scalar_lea.vmem %s0, %s229
      %s231 = smul.u32 2, %s20
      %s232 = smul.u32 2, %s20
      %p233 = scmp.lt.s32.totalorder %s19, 1
      %s234 = scalar_select %p233, %s19, 1
      %p235 = scmp.lt.s32.totalorder %s232, 1
      %s236 = scalar_select %p235, %s232, 1
      %s237 = smul.addr %s234, 2
      %s238 = sadd.s32 %s236, %s237
      %s239 = scalar_lea.vmem %s1, %s238
      %s240 = smul.u32 2, %s20
      %s241 = sadd.s32 %s19, %s20
      %s242 = smul.u32 2, %s241
      %p243 = scmp.lt.s32.totalorder %s242, 3
      %s244 = scalar_select %p243, %s242, 3
      %s245 = smul.addr %s244, 4
      %s246 = scalar_lea.vmem %s2, %s245
      %s247 = sadd.s32 %s19, %s20
      %s248 = smul.u32 2, %s247
      %s249 = sadd.s32 %s19, %s20
      %s250 = smul.u32 2, %s249
      %p251 = scmp.lt.s32.totalorder %s250, 3
      %s252 = scalar_select %p251, %s250, 3
      %s253 = smul.addr %s252, 2
      %s254 = scalar_lea.vmem %s3, %s253
      %s255 = sadd.s32 %s19, %s20
      %s256 = smul.u32 2, %s255
      %v257 = vld [vmem:[%s230] sm:$0xff]
      %v258 = vld [vmem:[%s239] sm:$0x3]
      %v260 = vcombine.high %v257, %v257
      %vm262 = vcmask 1043456
      %v263 = vsel %vm262, %v257, -inf
      %v264 = vrot.slane %v263, 4
      %v265 = vmax.f32 %v263, %v264
      %v266 = vrot.slane %v265, 2
      %v267 = vmax.f32 %v265, %v266
      %v268 = vrot.slane %v267, 1
      %v269 = vmax.f32 %v267, %v268
      %v270 = vsel %vm262, %v260, -inf
      %v271 = vrot.slane %v270, 4
      %v272 = vmax.f32 %v270, %v271
      %v273 = vrot.slane %v272, 2
      %v274 = vmax.f32 %v272, %v273
      %v275 = vrot.slane %v274, 1
      %v276 = vmax.f32 %v274, %v275
      %v279 = vcombine.low %v269, %v276
      %v281 = vsub.f32 %v257, %v279
      %v282 = vmul.f32 %v281, 1.442695
      %v283 = vpow.pop %v282
      %v285 = vcombine.high %v283, %v283
      %v287 = vsel %vm262, %v283, 0.0
      %v288 = vrot.slane %v287, 4
      %v289 = vadd.f32 %v287, %v288
      %v290 = vrot.slane %v289, 2
      %v291 = vadd.f32 %v289, %v290
      %v292 = vrot.slane %v291, 1
      %v293 = vadd.f32 %v291, %v292
      %v294 = vsel %vm262, %v285, 0.0
      %v295 = vrot.slane %v294, 4
      %v296 = vadd.f32 %v294, %v295
      %v297 = vrot.slane %v296, 2
      %v298 = vadd.f32 %v296, %v297
      %v299 = vrot.slane %v298, 1
      %v300 = vadd.f32 %v298, %v299
      %v301 = vrcp.pop %v293
      %v302 = vrcp.pop %v300
      %v305 = vcombine.low %v301, %v302
      %v307 = vmul.f32 %v283, %v305
      %v308 = vlaneseq
      %v309 = vshrl.u32 %v308, 7
      %v310 = vlaneseq
      %v311 = vshrl.u32 %v310, 7
      %v312 = vsub.s32 0, %v311
      %v313 = vrot.slane %v258, %v312
      %v314 = vlaneseq
      %v315 = vshrl.u32 %v314, 7
      %v316 = vsub.s32 1, %v315
      %v317 = vrot.slane %v258, %v316
      %vm318 = vcmp.eq.s32.totalorder %v309, %v313
      %vm319 = vcmp.eq.s32.totalorder %v309, %v317
      %v320 = vsel %vm318, 1, 0
      %v321 = vsel %vm319, 1, 0
      %v322 = vcvt.s32.f32 %v320
      %v323 = vcvt.s32.f32 %v321
      %vm324 = vcmp.ge.s32.totalorder %v258, 0
      %v326 = vcombine.high %v307, %v307
      %v328 = vsub.f32 %v322, %v307
      %v329 = vsub.f32 %v323, %v326
      %v330 = vand.u32 2147483647, %v328
      %v331 = vand.u32 2147483647, %v329
      %v332 = vsel %vm324, 1, 0
      %v333 = vlaneseq
      %v334 = vshrl.u32 %v333, 7
      %v335 = vsub.s32 0, %v334
      %v336 = vrot.slane %v332, %v335
      %v337 = vlaneseq
      %v338 = vshrl.u32 %v337, 7
      %v339 = vsub.s32 1, %v338
      %v340 = vrot.slane %v332, %v339
      %vm341 = vcmp.eq.s32.totalorder %v336, 1
      %vm342 = vcmp.eq.s32.totalorder %v340, 1
      %v343 = vsel %vm341, %v330, 0.0
      %v344 = vsel %vm342, %v331, 0.0
      %v347 = vcombine.low %v343, %v344
      %349 = vst [vmem:[%s246] sm:$0xff] %v347
      %v350 = vpack.c.bf16 %v322, %v322
      %v351 = vpack.c.bf16 %v323, %v323
      %v354 = vcombine.low %v350, %v351
      %v356 = vunpack.c.l.s4 1983009808
      %v357 = vunpack.c.0.s8 %v356
      %v358 = vlaneseq
      %v359 = vshrl.u32 %v358, 7
      %v360 = vsub.s32 %v357, %v359
      %v361 = vrot.slane %v354, %v360
      %363 = vst [vmem:[%s254] sm:$0xf] %v361
      %s364 = sadd.s32 %s19, %s20
      %s365 = smul.u32 2, %s364
      %p366 = scmp.lt.s32.totalorder %s365, 3
      %s367 = scalar_select %p366, %s365, 3
      %s368 = smul.addr %s367, 4
      %s369 = scalar_lea.vmem %s2, %s368
      %s370 = sadd.s32 %s19, %s20
      %s371 = smul.u32 2, %s370
      %p372 = scmp.lt.s32.totalorder %s371, 3
      %s373 = scalar_select %p372, %s371, 3
      %s374 = smul.addr %s373, 2
      %s375 = scalar_lea.vmem %s3, %s374
      // Predicated region
      $region29: #{lovasz_loss_softmax.2} parent=27 // pred_check
        %p376 = pneg %p103
      $region30: #{lovasz_loss_softmax.2} parent=27 // pred_check_branch
        %378 = sbr.rel (%p376) target = $region32
      $region31: #{lovasz_loss_softmax.2} parent=27 // pred_region
        %s379 = sadd.s32 %s19, %s20
        %s380 = smul.u32 2, %s379
      $region32: #{lovasz_loss_softmax.2} parent=27 // pred_fallthru
        _
      // Predicated region
      $region33: #{lovasz_loss_softmax.2} parent=27 // pred_check
        %p381 = pneg %p131
      $region34: #{lovasz_loss_softmax.2} parent=27 // pred_check_branch
        %383 = sbr.rel (%p381) target = $region36
      $region35: #{lovasz_loss_softmax.2} parent=27 // pred_region
        %s384 = sadd.s32 %s19, %s20
        %s385 = smul.u32 2, %s384
      $region36: #{lovasz_loss_softmax.2} parent=27 // pred_fallthru
        _
    $region28: #{lovasz_loss_softmax.2} parent=5 // pred_fallthru
      _
    %p386 = scmp.le.s32.totalorder 2, %s10
    // Predicated region
    $region37: #{lovasz_loss_softmax.2} parent=5 // pred_check
      %p387 = pneg %p386
    $region38: #{lovasz_loss_softmax.2} parent=5 // pred_check_branch
      %389 = sbr.rel (%p387) target = $region40
    $region39: #{lovasz_loss_softmax.2} parent=5 // pred_region
      %s390 = ssub.s32 %s10, 2
      // Predicated region
      $region41: #{lovasz_loss_softmax.2} parent=39 // pred_check
        %p391 = pneg %p109
      $region42: #{lovasz_loss_softmax.2} parent=39 // pred_check_branch
        %393 = sbr.rel (%p391) target = $region44
      $region43: #{lovasz_loss_softmax.2} parent=39 // pred_region
        %s394 = sadd.s32 %s21, %s22
        %s395 = smul.u32 2, %s394
        %p396 = scmp.lt.s32.totalorder %s395, 3
        %s397 = scalar_select %p396, %s395, 3
        %s398 = smul.addr %s397, 4
        %s399 = scalar_lea.vmem %s2, %s398
      $region44: #{lovasz_loss_softmax.2} parent=39 // pred_fallthru
        _
      // Predicated region
      $region45: #{lovasz_loss_softmax.2} parent=39 // pred_check
        %p400 = pneg %p137
      $region46: #{lovasz_loss_softmax.2} parent=39 // pred_check_branch
        %402 = sbr.rel (%p400) target = $region48
      $region47: #{lovasz_loss_softmax.2} parent=39 // pred_region
        %s403 = sadd.s32 %s21, %s22
        %s404 = smul.u32 2, %s403
        %p405 = scmp.lt.s32.totalorder %s404, 3
        %s406 = scalar_select %p405, %s404, 3
        %s407 = smul.addr %s406, 2
        %s408 = scalar_lea.vmem %s3, %s407
      $region48: #{lovasz_loss_softmax.2} parent=39 // pred_fallthru
        _
    $region40: #{lovasz_loss_softmax.2} parent=5 // pred_fallthru
      _
  $region6: #{lovasz_loss_softmax.2} parent=0 // loop_footer
    %s14 = sadd.s32 1, %s10
  $region7: #{lovasz_loss_softmax.2} parent=0 // loop_footer_branch
    %9 = sbr.rel target = $region3
  $region8: #{lovasz_loss_softmax.2} parent=0 // loop_exit
    _

// kernel: lovasz_loss_softmax.3
$region0: #{lovasz_loss_softmax.3}
  #allocation0 [shape = 'u32[]', space=smem, size = 0x4, offset = 0x4, fixed_abs, tag = 'smem constant byte address 0x4 - core index']
  #allocation1 [shape = 'u32[144,128]{1,0:T(1,128)}', space=vmem, size = 0x12000, scoped, tag = 'internal scratch']
  #allocation2 [shape = 'f32[4,1]{1,0:T(4,128)}', space=vmem, size = 0x800, scoped, tag = 'scratch operand']
  %s0 = inlined_call_operand.vmem [shape: s32[1,256], index: 0, kind: input, shape index: {}]
  %s1 = inlined_call_operand.vmem [shape: f32[4,512], index: 1, kind: input, shape index: {}]
  %s2 = inlined_call_operand.vmem [shape: bf16[4,512], index: 2, kind: input, shape index: {}]
  %s3 = inlined_call_operand.vmem [shape: f32[4,1], index: 3, kind: input, shape index: {}]
  %s4 = inlined_call_operand.vmem [shape: f32[4,1], index: 4, kind: output, shape index: {}]
  %s5 = sld [smem:[#allocation0]]
  $region53: #{lovasz_loss_softmax.3} parent=0
    _
  %s7 = ssub.s32 1, %s5
  %s8 = scalar_select 0, %s7, %s5
  loop: start=0, step=1, limit=4
  $region2: #{lovasz_loss_softmax.3} parent=0 // loop_pre_header
    _
  $region3: #{lovasz_loss_softmax.3} parent=0 // loop_header
    %s10 = sphi 0, %s14
    %p11 = scmp.ge.s32.totalorder %s10, 4
    %s18 = sphi 0, %s18
    %s20 = sphi 0, %s18
    %s21 = sphi 0, %s20
    %s35 = sphi 0, %s21
    %s41 = sphi 0, %s43
    %s44 = sphi 0, %s41
    %s45 = sphi 0, %s44
    %s61 = sphi 0, %s45
    %s67 = sphi 0, %s69
    %s70 = sphi 0, %s67
    %s71 = sphi 0, %s70
    %s87 = sphi 0, %s71
    %s91 = sphi 0, %s91
    %s93 = sphi 0, %s91
    %s94 = sphi 0, %s93
    %s108 = sphi 0, %s94
    %s112 = sphi 0, %s112
    %s114 = sphi 0, %s112
    %s115 = sphi 0, %s114
    %s129 = sphi 0, %s115
  $region4: #{lovasz_loss_softmax.3} parent=0 // loop_header_branch
    %13 = sbr.rel (%p11) target = $region8
  $region5: #{lovasz_loss_softmax.3} parent=0 // loop_body
    %s15 = ssub.s32 %s10, 1
    %s16 = ssub.s32 %s10, 2
    %s17 = sadd.s32 %s10, 1
    %s19 = sadd.s32 %s18, 1
    %p22 = scmp.eq.s32.totalorder %s10, 1
    %p23 = scmp.ne.s32.totalorder %s18, %s20
    %p24 = scmp.eq.s32.totalorder %s10, 0
    %p25 = por %p23, %p24
    %p26 = scmp.ne.s32.totalorder %s18, %s20
    %p27 = scmp.eq.s32.totalorder %s15, 1
    %p28 = por %p26, %p27
    %p29 = scmp.ne.s32.totalorder %s20, %s21
    %p30 = scmp.eq.s32.totalorder %s15, 0
    %p31 = por %p29, %p30
    %p32 = scmp.ne.s32.totalorder %s20, %s21
    %p33 = scmp.eq.s32.totalorder %s16, 1
    %p34 = por %p32, %p33
    %p36 = scmp.ne.s32.totalorder %s21, %s35
    %p37 = scmp.eq.s32.totalorder %s16, 0
    %p38 = por %p36, %p37
    %s39 = ssub.s32 %s10, %s17
    %p40 = scmp.eq.s32.totalorder %s39, 0
    %s42 = sadd.s32 %s41, 1
    %s43 = scalar_select %p40, %s41, %s42
    %p46 = pneg %p40
    %p47 = scmp.eq.s32.totalorder %s10, 1
    %p48 = por %p46, %p47
    %p49 = scmp.ne.s32.totalorder %s41, %s44
    %p50 = scmp.eq.s32.totalorder %s10, 0
    %p51 = por %p49, %p50
    %p52 = scmp.ne.s32.totalorder %s41, %s44
    %p53 = scmp.eq.s32.totalorder %s15, 1
    %p54 = por %p52, %p53
    %p55 = scmp.ne.s32.totalorder %s44, %s45
    %p56 = scmp.eq.s32.totalorder %s15, 0
    %p57 = por %p55, %p56
    %p58 = scmp.ne.s32.totalorder %s44, %s45
    %p59 = scmp.eq.s32.totalorder %s16, 1
    %p60 = por %p58, %p59
    %p62 = scmp.ne.s32.totalorder %s45, %s61
    %p63 = scmp.eq.s32.totalorder %s16, 0
    %p64 = por %p62, %p63
    %s65 = ssub.s32 %s10, %s17
    %p66 = scmp.eq.s32.totalorder %s65, 0
    %s68 = sadd.s32 %s67, 1
    %s69 = scalar_select %p66, %s67, %s68
    %p72 = pneg %p66
    %p73 = scmp.eq.s32.totalorder %s10, 1
    %p74 = por %p72, %p73
    %p75 = scmp.ne.s32.totalorder %s67, %s70
    %p76 = scmp.eq.s32.totalorder %s10, 0
    %p77 = por %p75, %p76
    %p78 = scmp.ne.s32.totalorder %s67, %s70
    %p79 = scmp.eq.s32.totalorder %s15, 1
    %p80 = por %p78, %p79
    %p81 = scmp.ne.s32.totalorder %s70, %s71
    %p82 = scmp.eq.s32.totalorder %s15, 0
    %p83 = por %p81, %p82
    %p84 = scmp.ne.s32.totalorder %s70, %s71
    %p85 = scmp.eq.s32.totalorder %s16, 1
    %p86 = por %p84, %p85
    %p88 = scmp.ne.s32.totalorder %s71, %s87
    %p89 = scmp.eq.s32.totalorder %s16, 0
    %p90 = por %p88, %p89
    %s92 = sadd.s32 %s91, 1
    %p95 = scmp.eq.s32.totalorder %s10, 1
    %p96 = scmp.ne.s32.totalorder %s91, %s93
    %p97 = scmp.eq.s32.totalorder %s10, 0
    %p98 = por %p96, %p97
    %p99 = scmp.ne.s32.totalorder %s91, %s93
    %p100 = scmp.eq.s32.totalorder %s15, 1
    %p101 = por %p99, %p100
    %p102 = scmp.ne.s32.totalorder %s93, %s94
    %p103 = scmp.eq.s32.totalorder %s15, 0
    %p104 = por %p102, %p103
    %p105 = scmp.ne.s32.totalorder %s93, %s94
    %p106 = scmp.eq.s32.totalorder %s16, 1
    %p107 = por %p105, %p106
    %p109 = scmp.ne.s32.totalorder %s94, %s108
    %p110 = scmp.eq.s32.totalorder %s16, 0
    %p111 = por %p109, %p110
    %s113 = sadd.s32 %s112, 1
    %p116 = scmp.eq.s32.totalorder %s10, 1
    %p117 = scmp.ne.s32.totalorder %s112, %s114
    %p118 = scmp.eq.s32.totalorder %s10, 0
    %p119 = por %p117, %p118
    %p120 = scmp.ne.s32.totalorder %s112, %s114
    %p121 = scmp.eq.s32.totalorder %s15, 1
    %p122 = por %p120, %p121
    %p123 = scmp.ne.s32.totalorder %s114, %s115
    %p124 = scmp.eq.s32.totalorder %s15, 0
    %p125 = por %p123, %p124
    %p126 = scmp.ne.s32.totalorder %s114, %s115
    %p127 = scmp.eq.s32.totalorder %s16, 1
    %p128 = por %p126, %p127
    %p130 = scmp.ne.s32.totalorder %s115, %s129
    %p131 = scmp.eq.s32.totalorder %s16, 0
    %p132 = por %p130, %p131
    %p133 = scmp.le.s32.totalorder 1, %s10
    %p134 = scmp.lt.s32.totalorder %s10, 3
    %p135 = pnand %p133, %p134
    %p136 = pneg %p135
    // Predicated region
    $region9: #{lovasz_loss_softmax.3} parent=5 // pred_check
      _
    $region10: #{lovasz_loss_softmax.3} parent=5 // pred_check_branch
      %138 = sbr.rel (%p135) target = $region12
    $region11: #{lovasz_loss_softmax.3} parent=5 // pred_region
      %s139 = ssub.s32 %s10, 1
      // Predicated region
      $region13: #{lovasz_loss_softmax.3} parent=11 // pred_check
        %p140 = pneg %p31
      $region14: #{lovasz_loss_softmax.3} parent=11 // pred_check_branch
        %142 = sbr.rel (%p140) target = $region16
      $region15: #{lovasz_loss_softmax.3} parent=11 // pred_region
        _
      $region16: #{lovasz_loss_softmax.3} parent=11 // pred_fallthru
        _
      // Predicated region
      $region17: #{lovasz_loss_softmax.3} parent=11 // pred_check
        %p143 = pneg %p104
      $region18: #{lovasz_loss_softmax.3} parent=11 // pred_check_branch
        %145 = sbr.rel (%p143) target = $region20
      $region19: #{lovasz_loss_softmax.3} parent=11 // pred_region
        _
      $region20: #{lovasz_loss_softmax.3} parent=11 // pred_fallthru
        _
    $region12: #{lovasz_loss_softmax.3} parent=5 // pred_fallthru
      _
    %p146 = scmp.lt.s32.totalorder %s10, 2
    // Predicated region
    $region21: #{lovasz_loss_softmax.3} parent=5 // pred_check
      %p147 = pneg %p146
    $region22: #{lovasz_loss_softmax.3} parent=5 // pred_check_branch
      %149 = sbr.rel (%p147) target = $region24
    $region23: #{lovasz_loss_softmax.3} parent=5 // pred_region
      // Predicated region
      $region25: #{lovasz_loss_softmax.3} parent=23 // pred_check
        %p150 = pneg %p51
      $region26: #{lovasz_loss_softmax.3} parent=23 // pred_check_branch
        %152 = sbr.rel (%p150) target = $region28
      $region27: #{lovasz_loss_softmax.3} parent=23 // pred_region
        %s153 = smul.u32 2, %s10
        %p154 = scmp.lt.s32.totalorder %s153, 3
        %s155 = scalar_select %p154, %s153, 3
        %s156 = smul.addr %s155, 4
        %s157 = scalar_lea.vmem %s1, %s156
        %s158 = smul.u32 2, %s10
      $region28: #{lovasz_loss_softmax.3} parent=23 // pred_fallthru
        _
      // Predicated region
      $region29: #{lovasz_loss_softmax.3} parent=23 // pred_check
        %p159 = pneg %p77
      $region30: #{lovasz_loss_softmax.3} parent=23 // pred_check_branch
        %161 = sbr.rel (%p159) target = $region32
      $region31: #{lovasz_loss_softmax.3} parent=23 // pred_region
        %s162 = smul.u32 2, %s10
        %p163 = scmp.lt.s32.totalorder %s162, 3
        %s164 = scalar_select %p163, %s162, 3
        %s165 = smul.addr %s164, 2
        %s166 = scalar_lea.vmem %s2, %s165
        %s167 = smul.u32 2, %s10
      $region32: #{lovasz_loss_softmax.3} parent=23 // pred_fallthru
        _
    $region24: #{lovasz_loss_softmax.3} parent=5 // pred_fallthru
      _
    %p168 = scmp.le.s32.totalorder 1, %s10
    %p169 = scmp.lt.s32.totalorder %s10, 3
    %p170 = pnand %p168, %p169
    %p171 = pneg %p170
    // Predicated region
    $region33: #{lovasz_loss_softmax.3} parent=5 // pred_check
      _
    $region34: #{lovasz_loss_softmax.3} parent=5 // pred_check_branch
      %173 = sbr.rel (%p170) target = $region36
    $region35: #{lovasz_loss_softmax.3} parent=5 // pred_region
      %s174 = ssub.s32 %s10, 1
      %p175 = pneg %p31
      %p176 = pneg %p28
      %s177 = smul.u32 2, %s15
      %p178 = scmp.lt.s32.totalorder %s177, 3
      %s179 = scalar_select %p178, %s177, 3
      %s180 = smul.addr %s179, 4
      %s181 = scalar_lea.vmem %s1, %s180
      %p182 = pneg %p57
      %p183 = pneg %p54
      %s184 = smul.u32 2, %s15
      %p185 = scmp.lt.s32.totalorder %s184, 3
      %s186 = scalar_select %p185, %s184, 3
      %s187 = smul.addr %s186, 2
      %s188 = scalar_lea.vmem %s2, %s187
      %p189 = pneg %p83
      %p190 = pneg %p80
      %p191 = pneg %p104
      %p192 = pneg %p101
      %p193 = pneg %p125
      %p194 = pneg %p122
      %s195 = smul.u32 2, %s15
      %p196 = scmp.lt.s32.totalorder %s195, 3
      %s197 = scalar_select %p196, %s195, 3
      %s198 = smul.addr %s197, 4
      %s199 = scalar_lea.vmem %s1, %s198
      %s200 = smul.u32 2, %s15
      %s201 = smul.u32 2, %s15
      %p202 = scmp.lt.s32.totalorder %s201, 3
      %s203 = scalar_select %p202, %s201, 3
      %s204 = smul.addr %s203, 2
      %s205 = scalar_lea.vmem %s2, %s204
      %s206 = smul.u32 2, %s15
      %p207 = scmp.eq.s32.totalorder %s15, 0
      // Predicated region
      $region37: #{lovasz_loss_softmax.3} parent=35 // pred_check
        %p208 = pneg %p207
      $region38: #{lovasz_loss_softmax.3} parent=35 // pred_check_branch
        %210 = sbr.rel (%p208) target = $region40
      $region39: #{lovasz_loss_softmax.3} parent=35 // pred_region
        %vm211 = vcmask 3072
        %212 = vst.msk [vmem:[%s4] sm:$0xf] %vm211, 0.0
        %213 = vst.msk [vmem:[#allocation2] sm:$0xf] %vm211, 0.0
      $region40: #{lovasz_loss_softmax.3} parent=35 // pred_fallthru
        _
      %v214 = vld [vmem:[%s205] sm:$0xf]
      %v215 = vunpack.c.l.bf16 %v214
      %v216 = vld [vmem:[%s199] sm:$0xff]
      %v217 = vld [vmem:[%s0] sm:$0x3]
      %v219 = vcombine.high %v215, %v215
      %221 = vrot.lane.b32.xlu0 %v215, 1
      %v222 = vpop.permute.xlu0 %221
      %223 = vrot.lane.b32.xlu0 %v219, 1
      %v224 = vpop.permute.xlu0 %223
      %v225 = vlaneseq
      %v226 = vand.u32 %v225, 127
      %vm227 = vcmp.lt.s32.totalorder %v226, 1
      %v228 = vsel %vm227, %v222, %v224
      %v229 = vsel %vm227, %v224, %v222
      %vm230 = vcmp.ge.s32.totalorder %v217, 1
      %v231 = vsel %vm230, 1, 0
      %v232 = vlaneseq
      %v233 = vshrl.u32 %v232, 7
      %v234 = vsub.s32 0, %v233
      %v235 = vrot.slane %v231, %v234
      %v236 = vlaneseq
      %v237 = vshrl.u32 %v236, 7
      %v238 = vsub.s32 1, %v237
      %v239 = vrot.slane %v231, %v238
      %vm240 = vcmp.eq.s32.totalorder %v235, 1
      %vm241 = vcmp.eq.s32.totalorder %v239, 1
      %v242 = vsel %vm240, %v229, 0.0
      %v243 = vsel %vm241, %v228, 0.0
      %v246 = vcombine.low %v242, %v243
      %v248 = vadd.f32 %v215, %v246
      %v250 = vcombine.high %v248, %v248
      %252 = vrot.lane.b32.xlu0 %v248, 2
      %v253 = vpop.permute.xlu0 %252
      %254 = vrot.lane.b32.xlu0 %v250, 2
      %v255 = vpop.permute.xlu0 %254
      %vm256 = vcmp.lt.s32.totalorder %v226, 2
      %v257 = vsel %vm256, %v253, %v255
      %v258 = vsel %vm256, %v255, %v253
      %vm259 = vcmp.ge.s32.totalorder %v217, 2
      %v260 = vsel %vm259, 1, 0
      %v261 = vlaneseq
      %v262 = vshrl.u32 %v261, 7
      %v263 = vsub.s32 0, %v262
      %v264 = vrot.slane %v260, %v263
      %v265 = vlaneseq
      %v266 = vshrl.u32 %v265, 7
      %v267 = vsub.s32 1, %v266
      %v268 = vrot.slane %v260, %v267
      %vm269 = vcmp.eq.s32.totalorder %v264, 1
      %vm270 = vcmp.eq.s32.totalorder %v268, 1
      %v271 = vsel %vm269, %v258, 0.0
      %v272 = vsel %vm270, %v257, 0.0
      %v275 = vcombine.low %v271, %v272
      %v277 = vadd.f32 %v248, %v275
      %v279 = vcombine.high %v277, %v277
      %281 = vrot.lane.b32.xlu0 %v277, 4
      %v282 = vpop.permute.xlu0 %281
      %283 = vrot.lane.b32.xlu0 %v279, 4
      %v284 = vpop.permute.xlu0 %283
      %vm285 = vcmp.lt.s32.totalorder %v226, 4
      %v286 = vsel %vm285, %v282, %v284
      %v287 = vsel %vm285, %v284, %v282
      %vm288 = vcmp.ge.s32.totalorder %v217, 4
      %v289 = vsel %vm288, 1, 0
      %v290 = vlaneseq
      %v291 = vshrl.u32 %v290, 7
      %v292 = vsub.s32 0, %v291
      %v293 = vrot.slane %v289, %v292
      %v294 = vlaneseq
      %v295 = vshrl.u32 %v294, 7
      %v296 = vsub.s32 1, %v295
      %v297 = vrot.slane %v289, %v296
      %vm298 = vcmp.eq.s32.totalorder %v293, 1
      %vm299 = vcmp.eq.s32.totalorder %v297, 1
      %v300 = vsel %vm298, %v287, 0.0
      %v301 = vsel %vm299, %v286, 0.0
      %v304 = vcombine.low %v300, %v301
      %v306 = vadd.f32 %v277, %v304
      %v308 = vcombine.high %v306, %v306
      %310 = vrot.lane.b32.xlu0 %v306, 8
      %v311 = vpop.permute.xlu0 %310
      %312 = vrot.lane.b32.xlu0 %v308, 8
      %v313 = vpop.permute.xlu0 %312
      %vm314 = vcmp.lt.s32.totalorder %v226, 8
      %v315 = vsel %vm314, %v311, %v313
      %v316 = vsel %vm314, %v313, %v311
      %vm317 = vcmp.ge.s32.totalorder %v217, 8
      %v318 = vsel %vm317, 1, 0
      %v319 = vlaneseq
      %v320 = vshrl.u32 %v319, 7
      %v321 = vsub.s32 0, %v320
      %v322 = vrot.slane %v318, %v321
      %v323 = vlaneseq
      %v324 = vshrl.u32 %v323, 7
      %v325 = vsub.s32 1, %v324
      %v326 = vrot.slane %v318, %v325
      %vm327 = vcmp.eq.s32.totalorder %v322, 1
      %vm328 = vcmp.eq.s32.totalorder %v326, 1
      %v329 = vsel %vm327, %v316, 0.0
      %v330 = vsel %vm328, %v315, 0.0
      %v333 = vcombine.low %v329, %v330
      %v335 = vadd.f32 %v306, %v333
      %v337 = vcombine.high %v335, %v335
      %339 = vrot.lane.b32.xlu0 %v335, 16
      %v340 = vpop.permute.xlu0 %339
      %341 = vrot.lane.b32.xlu0 %v337, 16
      %v342 = vpop.permute.xlu0 %341
      %vm343 = vcmp.lt.s32.totalorder %v226, 16
      %v344 = vsel %vm343, %v340, %v342
      %v345 = vsel %vm343, %v342, %v340
      %vm346 = vcmp.ge.s32.totalorder %v217, 16
      %v347 = vsel %vm346, 1, 0
      %v348 = vlaneseq
      %v349 = vshrl.u32 %v348, 7
      %v350 = vsub.s32 0, %v349
      %v351 = vrot.slane %v347, %v350
      %v352 = vlaneseq
      %v353 = vshrl.u32 %v352, 7
      %v354 = vsub.s32 1, %v353
      %v355 = vrot.slane %v347, %v354
      %vm356 = vcmp.eq.s32.totalorder %v351, 1
      %vm357 = vcmp.eq.s32.totalorder %v355, 1
      %v358 = vsel %vm356, %v345, 0.0
      %v359 = vsel %vm357, %v344, 0.0
      %v362 = vcombine.low %v358, %v359
      %v364 = vadd.f32 %v335, %v362
      %v366 = vcombine.high %v364, %v364
      %368 = vrot.lane.b32.xlu0 %v364, 32
      %v369 = vpop.permute.xlu0 %368
      %370 = vrot.lane.b32.xlu0 %v366, 32
      %v371 = vpop.permute.xlu0 %370
      %vm372 = vcmp.lt.s32.totalorder %v226, 32
      %v373 = vsel %vm372, %v369, %v371
      %v374 = vsel %vm372, %v371, %v369
      %vm375 = vcmp.ge.s32.totalorder %v217, 32
      %v376 = vsel %vm375, 1, 0
      %v377 = vlaneseq
      %v378 = vshrl.u32 %v377, 7
      %v379 = vsub.s32 0, %v378
      %v380 = vrot.slane %v376, %v379
      %v381 = vlaneseq
      %v382 = vshrl.u32 %v381, 7
      %v383 = vsub.s32 1, %v382
      %v384 = vrot.slane %v376, %v383
      %vm385 = vcmp.eq.s32.totalorder %v380, 1
      %vm386 = vcmp.eq.s32.totalorder %v384, 1
      %v387 = vsel %vm385, %v374, 0.0
      %v388 = vsel %vm386, %v373, 0.0
      %v391 = vcombine.low %v387, %v388
      %v393 = vadd.f32 %v364, %v391
      %v395 = vcombine.high %v393, %v393
      %397 = vrot.lane.b32.xlu0 %v393, 64
      %v398 = vpop.permute.xlu0 %397
      %399 = vrot.lane.b32.xlu0 %v395, 64
      %v400 = vpop.permute.xlu0 %399
      %vm401 = vcmp.lt.s32.totalorder %v226, 64
      %v402 = vsel %vm401, %v398, %v400
      %v403 = vsel %vm401, %v400, %v398
      %vm404 = vcmp.ge.s32.totalorder %v217, 64
      %v405 = vsel %vm404, 1, 0
      %v406 = vlaneseq
      %v407 = vshrl.u32 %v406, 7
      %v408 = vsub.s32 0, %v407
      %v409 = vrot.slane %v405, %v408
      %v410 = vlaneseq
      %v411 = vshrl.u32 %v410, 7
      %v412 = vsub.s32 1, %v411
      %v413 = vrot.slane %v405, %v412
      %vm414 = vcmp.eq.s32.totalorder %v409, 1
      %vm415 = vcmp.eq.s32.totalorder %v413, 1
      %v416 = vsel %vm414, %v403, 0.0
      %v417 = vsel %vm415, %v402, 0.0
      %v420 = vcombine.low %v416, %v417
      %v422 = vadd.f32 %v393, %v420
      %v424 = vcombine.high %v422, %v422
      %vm426 = vcmp.ge.s32.totalorder %v217, 128
      %v427 = vsel %vm426, 1, 0
      %v428 = vlaneseq
      %v429 = vshrl.u32 %v428, 7
      %v430 = vsub.s32 0, %v429
      %v431 = vrot.slane %v427, %v430
      %v432 = vlaneseq
      %v433 = vshrl.u32 %v432, 7
      %v434 = vsub.s32 1, %v433
      %v435 = vrot.slane %v427, %v434
      %vm436 = vcmp.eq.s32.totalorder %v431, 1
      %vm437 = vcmp.eq.s32.totalorder %v435, 1
      %v438 = vsel %vm436, %v424, 0.0
      %v439 = vsel %vm437, %v422, 0.0
      %v442 = vcombine.low %v438, %v439
      %v444 = vadd.f32 %v422, %v442
      %v445 = vld [vmem:[#allocation2] sm:$0xf]
      %447 = vset.pattern.permute.xlu0 0
      %448 = vperm.xlu0 %447, %v445
      %v449 = vpop.permute.xlu0 %448
      %v452 = vcombine.high %v444, %v444
      %v454 = vadd.f32 %v449, %v444
      %v455 = vadd.f32 %v449, %v452
      %v456 = vsub.f32 %v454, %v215
      %v457 = vsub.f32 %v455, %v219
      %s458 = smul.u32 %s15, 256
      %v459 = vstv %s458
      %v460 = vadd.s32 %v217, %v459
      %v461 = vadd.s32 %v460, 1
      %v462 = vcvt.s32.f32 %v461
      %v463 = vld [vmem:[%s3] sm:$0xf]
      %v465 = vlaneseq
      %v466 = vshrl.u32 %v465, 7
      %v467 = vsub.s32 0, %v466
      %v468 = vrot.slane %v462, %v467
      %v469 = vlaneseq
      %v470 = vshrl.u32 %v469, 7
      %v471 = vsub.s32 1, %v470
      %v472 = vrot.slane %v462, %v471
      %v475 = vsub.f32 %v468, %v454
      %v476 = vsub.f32 %v472, %v455
      %478 = vset.pattern.permute.xlu0 0
      %479 = vperm.xlu0 %478, %v463
      %v480 = vpop.permute.xlu0 %479
      %v482 = vadd.f32 %v480, %v475
      %v483 = vadd.f32 %v480, %v476
      %v484 = vsub.f32 %v462, 1.0
      %v486 = vlaneseq
      %v487 = vshrl.u32 %v486, 7
      %v488 = vsub.s32 0, %v487
      %v489 = vrot.slane %v484, %v488
      %v490 = vlaneseq
      %v491 = vshrl.u32 %v490, 7
      %v492 = vsub.s32 1, %v491
      %v493 = vrot.slane %v484, %v492
      %v496 = vsub.f32 %v489, %v456
      %v497 = vsub.f32 %v493, %v457
      %v498 = vadd.f32 %v480, %v496
      %v499 = vadd.f32 %v480, %v497
      %v500 = vmax.f32 %v498, 1e-06
      %v501 = vmax.f32 %v499, 1e-06
      %v502 = vsub.f32 %v480, %v454
      %v503 = vsub.f32 %v480, %v455
      %v504 = vrcp.pop %v482
      %v505 = vmul.f32 %v502, %v504
      %v506 = vrcp.pop %v483
      %v507 = vmul.f32 %v503, %v506
      %v508 = vsub.f32 1.0, %v505
      %v509 = vsub.f32 1.0, %v507
      %v510 = vsub.f32 %v480, %v456
      %v511 = vsub.f32 %v480, %v457
      %v512 = vrcp.pop %v500
      %v513 = vmul.f32 %v510, %v512
      %v514 = vrcp.pop %v501
      %v515 = vmul.f32 %v511, %v514
      %v516 = vsub.f32 1.0, %v513
      %v517 = vsub.f32 1.0, %v515
      %v518 = vsub.f32 %v508, %v516
      %v519 = vsub.f32 %v509, %v517
      %v520 = vld [vmem:[%s4] sm:$0xf]
      %v523 = vcombine.low %v518, %v519
      %v525 = vmul.f32 %v216, %v523
      %v527 = vcombine.high %v525, %v525
      %vm529 = vcmask 1043456
      %v530 = vsel %vm529, %v525, 0.0
      %v531 = vsel %vm529, %v527, 0.0
      %v532 = vadd.f32 %v530, %v531
      %533 = vadd.xlane.f32.xlu0 %v532
      %v534 = vpop.xlane.xlu0 %533
      %v535 = vadd.f32 %v520, %v534
      %vm536 = vcmask 3072
      %537 = vst.msk [vmem:[%s4] sm:$0xf] %vm536, %v535
      %539 = vrot.lane.b32.xlu0 %v455, 1
      %v540 = vpop.permute.xlu0 %539
      %542 = vst.msk [vmem:[#allocation2] sm:$0xf] %vm536, %v540
      // Predicated region
      $region41: #{lovasz_loss_softmax.3} parent=35 // pred_check
        %p543 = pneg %p122
      $region42: #{lovasz_loss_softmax.3} parent=35 // pred_check_branch
        %545 = sbr.rel (%p543) target = $region44
      $region43: #{lovasz_loss_softmax.3} parent=35 // pred_region
        _
      $region44: #{lovasz_loss_softmax.3} parent=35 // pred_fallthru
        _
      // Predicated region
      $region45: #{lovasz_loss_softmax.3} parent=35 // pred_check
        %p546 = pneg %p122
      $region46: #{lovasz_loss_softmax.3} parent=35 // pred_check_branch
        %548 = sbr.rel (%p546) target = $region48
      $region47: #{lovasz_loss_softmax.3} parent=35 // pred_region
        _
      $region48: #{lovasz_loss_softmax.3} parent=35 // pred_fallthru
        _
    $region36: #{lovasz_loss_softmax.3} parent=5 // pred_fallthru
      _
    %p549 = scmp.le.s32.totalorder 2, %s10
    // Predicated region
    $region49: #{lovasz_loss_softmax.3} parent=5 // pred_check
      %p550 = pneg %p549
    $region50: #{lovasz_loss_softmax.3} parent=5 // pred_check_branch
      %552 = sbr.rel (%p550) target = $region52
    $region51: #{lovasz_loss_softmax.3} parent=5 // pred_region
      %s553 = ssub.s32 %s10, 2
    $region52: #{lovasz_loss_softmax.3} parent=5 // pred_fallthru
      _
  $region6: #{lovasz_loss_softmax.3} parent=0 // loop_footer
    %s14 = sadd.s32 1, %s10
  $region7: #{lovasz_loss_softmax.3} parent=0 // loop_footer_branch
    %9 = sbr.rel target = $region3
  $region8: #{lovasz_loss_softmax.3} parent=0 // loop_exit
    _

</llo_original>
